<compile_context>
chip_gen: v6e
topology: v6e:2x2x1
jax: 0.10.0
libtpu: 0.0.40
codegen_flags: <defaults>
</compile_context>

<pallas_src>
import numpy as np
import jax
import jax.numpy as jnp
from jax.experimental import pallas as pl
from jax.experimental.pallas import tpu as pltpu


# ------------------------------------------------------------------------
# DDPM.register_schedule buffers (numpy "parameter" setup, not the hot path)
# ------------------------------------------------------------------------
def make_ddpm_buffers(timesteps=1000, linear_start=1e-4, linear_end=2e-2, v_posterior=0.0):
    # 'linear' beta schedule, float64 exactly like torch.linspace(...)**2
    betas = np.linspace(linear_start ** 0.5, linear_end ** 0.5, timesteps, dtype=np.float64) ** 2
    alphas = 1.0 - betas
    alphas_cumprod = np.cumprod(alphas, axis=0)
    alphas_cumprod_prev = np.append(1.0, alphas_cumprod[:-1])

    sqrt_alphas_cumprod = np.sqrt(alphas_cumprod)
    sqrt_one_minus_alphas_cumprod = np.sqrt(1.0 - alphas_cumprod)

    posterior_variance = (
        (1 - v_posterior) * betas * (1.0 - alphas_cumprod_prev) / (1.0 - alphas_cumprod)
        + v_posterior * betas
    )
    # eps-parameterization lvlb weights
    lvlb_weights = betas ** 2 / (2 * posterior_variance * alphas * (1 - alphas_cumprod))
    lvlb_weights[0] = lvlb_weights[1]

    return (
        jnp.asarray(sqrt_alphas_cumprod, jnp.float32),
        jnp.asarray(sqrt_one_minus_alphas_cumprod, jnp.float32),
        jnp.asarray(lvlb_weights, jnp.float32),
    )


def _pick_block_rows(batch, row_bytes, target_bytes=2 << 20):
    """Rows per block: whole batch if it fits ~2 MiB per input block, else the
    largest multiple of 8 that divides the batch and fits the budget.
    (2 inputs x 2 double-buffers x 2 MiB ~= 8 MiB << 32 MiB scoped VMEM on all gens.)"""
    if batch * row_bytes <= target_bytes:
        return batch
    tb = (min(batch, max(8, target_bytes // row_bytes)) // 8) * 8
    while tb >= 8:
        if batch % tb == 0:
            return tb
        tb -= 8
    return batch


# ------------------------------------------------------------------------
# Pallas kernel: q_sample + stand-in model + per-batch l2 loss
# ------------------------------------------------------------------------
def _make_kernel(C, HW):
    D = C * HW

    def ddpm_p_losses_kernel(
        w_ref,      # SMEM f32 (C*C,)   -- stand-in 1x1-conv weight, flattened
        a_ref,      # VMEM f32 (TB, 1)  -- sqrt_alphas_cumprod[t] per batch row
        s_ref,      # VMEM f32 (TB, 1)  -- sqrt_one_minus_alphas_cumprod[t] per batch row
        x_ref,      # VMEM bf16 (TB, C*HW) -- x_start slab
        noise_ref,  # VMEM bf16 (TB, C*HW) -- gaussian noise slab
        loss_ref,   # VMEM f32 (TB, 1)  -- per-batch loss (mean over C,H,W)
    ):
        # upcast bf16 -> f32 right after load; all arithmetic stays f32 (v5e-safe)
        x = x_ref[...].astype(jnp.float32)
        noise = noise_ref[...].astype(jnp.float32)

        # q_sample: per-row scales broadcast across the lane-dense flattened dims
        x_noisy = a_ref[...] * x + s_ref[...] * noise

        # Stand-in "UNet" = 1x1 conv over channels, unrolled VPU FMAs over
        # lane-aligned channel chunks (HW is a multiple of 128) -- no MXU.
        # TODO(synk): UNetModel is not defined in the reference source; this is a
        #             deterministic stand-in so the hot path stays in-kernel.
        sq_acc = None
        for c in range(C):
            mo_c = w_ref[c * C] * x_noisy[:, 0:HW]
            for j in range(1, C):
                mo_c = mo_c + w_ref[c * C + j] * x_noisy[:, j * HW:(j + 1) * HW]
            d = mo_c - noise[:, c * HW:(c + 1) * HW]
            sq = d * d
            sq_acc = sq if sq_acc is None else sq_acc + sq

        # per-batch-row mean over (C, H, W): single cross-lane reduction
        loss_ref[...] = jnp.sum(sq_acc, axis=-1, keepdims=True) * (1.0 / D)

    return ddpm_p_losses_kernel


# ------------------------------------------------------------------------
# Wrapper: RNG for t / noise, schedule buffers, pallas_call, scalar reductions
# ------------------------------------------------------------------------
def ddpm_forward(x, key, *, timesteps=1000, l_simple_weight=1.0, original_elbo_weight=0.0):
    B, C, H, W = x.shape
    HW = H * W
    D = C * HW

    k_t, k_noise, k_w = jax.random.split(key, 3)
    # DDPM.forward: t = torch.randint(0, num_timesteps, (B,))
    t = jax.random.randint(k_t, (B,), 0, timesteps, dtype=jnp.int32)
    # p_losses: noise = torch.randn_like(x_start)
    noise = jax.random.normal(k_noise, (B, C, H, W), dtype=jnp.float32)
    # deterministic stand-in UNet parameter (1x1 conv over channels)
    w = (jax.random.normal(k_w, (C, C), dtype=jnp.float32) / np.sqrt(C)).astype(jnp.float32)

    sac, s1ac, lvlb = make_ddpm_buffers(timesteps)

    # bf16 HBM storage for the big tensors (halves read traffic); f32 compute in-kernel
    x_bf = x.reshape(B, D).astype(jnp.bfloat16)
    noise_bf = noise.reshape(B, D).astype(jnp.bfloat16)

    # gather the per-batch schedule scalars in the wrapper (no SMEM tables in kernel)
    a = sac[t].reshape(B, 1)
    s = s1ac[t].reshape(B, 1)
    lw = lvlb[t]

    w_flat = w.reshape(C * C)

    tb = _pick_block_rows(B, D * 2)  # 2 bytes/elem (bf16)
    grid = (B // tb,)

    grid_spec = pltpu.PrefetchScalarGridSpec(
        num_scalar_prefetch=0,
        grid=grid,
        in_specs=[
            pl.BlockSpec(memory_space=pltpu.MemorySpace.SMEM),   # w (C*C,)
            pl.BlockSpec((tb, 1), lambda i: (i, 0)),             # a = sqrt_alphas_cumprod[t]
            pl.BlockSpec((tb, 1), lambda i: (i, 0)),             # s = sqrt_one_minus_alphas_cumprod[t]
            pl.BlockSpec((tb, D), lambda i: (i, 0)),             # x_start (bf16)
            pl.BlockSpec((tb, D), lambda i: (i, 0)),             # noise (bf16)
        ],
        out_specs=pl.BlockSpec((tb, 1), lambda i: (i, 0)),       # per-batch loss
    )

    loss_b2d = pl.pallas_call(
        _make_kernel(C, HW),
        grid_spec=grid_spec,
        out_shape=jax.ShapeDtypeStruct((B, 1), jnp.float32),
        compiler_params=pltpu.CompilerParams(
            # no cross-step accumulation left in the kernel -> batch axis is parallel
            # (shards across both TensorCores on v7x; neutral on v5e/v6e)
            dimension_semantics=("parallel",)),
    )(w_flat, a, s, x_bf, noise_bf)

    loss_b = loss_b2d[:, 0]
    # B-length scalar reductions are trivial: do them in plain JAX outside the kernel
    loss_simple = loss_b.mean()
    loss_vlb = (lw * loss_b).mean()
    loss = l_simple_weight * loss_simple + original_elbo_weight * loss_vlb
    loss_dict = {
        "train/loss_simple": loss_simple,
        "train/loss_vlb": loss_vlb,
        "train/loss": loss,
    }
    aux = (t, x_bf, noise_bf, w, sac, s1ac, lvlb, loss_b)
    return loss, loss_dict, aux


# Pure-JAX reference of the same forward (same bf16-rounded inputs) for a sanity check
def ddpm_forward_ref(x_bf, t, noise_bf, w, sac, s1ac, lvlb, C, HW,
                     l_simple_weight=1.0, original_elbo_weight=0.0):
    B = x_bf.shape[0]
    xf = x_bf.astype(jnp.float32).reshape(B, C, HW)
    nf = noise_bf.astype(jnp.float32).reshape(B, C, HW)
    a = sac[t][:, None, None]
    s = s1ac[t][:, None, None]
    x_noisy = a * xf + s * nf
    model_out = jnp.einsum("ij,bjk->bik", w, x_noisy,
                           precision=jax.lax.Precision.HIGHEST)
    loss_b = jnp.mean((model_out - nf) ** 2, axis=(1, 2))
    loss_simple = loss_b.mean()
    loss_vlb = (lvlb[t] * loss_b).mean()
    return l_simple_weight * loss_simple + original_elbo_weight * loss_vlb, loss_b


if __name__ == "__main__":
    key = jax.random.PRNGKey(0)
    kx, kfwd = jax.random.split(key)

    B, C, H, W = 2, 4, 16, 16          # small shapes consistent with NCHW image input
    x = jax.random.normal(kx, (B, C, H, W), dtype=jnp.float32)

    loss, loss_dict, aux = ddpm_forward(x, kfwd, timesteps=1000)
    jax.block_until_ready(loss)
    jax.block_until_ready(loss_dict)

    # sanity check vs. plain-JAX reference on identical (bf16-rounded) inputs
    t, x_bf, noise_bf, w, sac, s1ac, lvlb, loss_b = aux
    loss_ref, loss_b_ref = ddpm_forward_ref(x_bf, t, noise_bf, w, sac, s1ac, lvlb, C, H * W)
    assert np.allclose(np.asarray(loss_b), np.asarray(loss_b_ref), rtol=1e-3, atol=1e-5)
    assert np.allclose(np.asarray(loss), np.asarray(loss_ref), rtol=1e-3, atol=1e-5)
    assert np.isfinite(np.asarray(loss)).all()

    print("KERNEL_OK")
</pallas_src>

<mosaic_0001>
module attributes {stable_mosaic.version = 11 : i64} {
  func.func @ddpm_p_losses_kernel(%arg0: i32, %arg1: memref<16xf32, #tpu.memory_space<smem>>, %arg2: memref<2x1xf32, #tpu.memory_space<vmem>>, %arg3: memref<2x1xf32, #tpu.memory_space<vmem>>, %arg4: memref<2x1024xbf16, #tpu.memory_space<vmem>>, %arg5: memref<2x1024xbf16, #tpu.memory_space<vmem>>, %arg6: memref<2x1xf32, #tpu.memory_space<vmem>>) attributes {dimension_semantics = [#tpu.dimension_semantics<parallel>], iteration_bounds = array<i64: 1>, scalar_prefetch = 0 : i64, scratch_operands = 0 : i64, tpu.core_type = #tpu.core_type<tc>, window_params = [{transform_indices = @transform_0, window_bounds = array<i64: 16>}, {transform_indices = @transform_1, window_bounds = array<i64: 2, 1>}, {transform_indices = @transform_2, window_bounds = array<i64: 2, 1>}, {transform_indices = @transform_3, window_bounds = array<i64: 2, 1024>}, {transform_indices = @transform_4, window_bounds = array<i64: 2, 1024>}, {transform_indices = @transform_5, window_bounds = array<i64: 2, 1>}]} {
    %c0 = arith.constant 0 : index
    %c0_0 = arith.constant 0 : index
    %0 = vector.load %arg4[%c0, %c0_0] : memref<2x1024xbf16, #tpu.memory_space<vmem>>, vector<2x1024xbf16>
    %1 = arith.extf %0 : vector<2x1024xbf16> to vector<2x1024xf32>
    %c0_1 = arith.constant 0 : index
    %c0_2 = arith.constant 0 : index
    %2 = vector.load %arg5[%c0_1, %c0_2] : memref<2x1024xbf16, #tpu.memory_space<vmem>>, vector<2x1024xbf16>
    %3 = arith.extf %2 : vector<2x1024xbf16> to vector<2x1024xf32>
    %c0_3 = arith.constant 0 : index
    %c0_4 = arith.constant 0 : index
    %4 = vector.load %arg2[%c0_3, %c0_4] : memref<2x1xf32, #tpu.memory_space<vmem>>, vector<2x1xf32>
    %5 = vector.broadcast %4 : vector<2x1xf32> to vector<2x1024xf32>
    %6 = arith.mulf %5, %1 : vector<2x1024xf32>
    %c0_5 = arith.constant 0 : index
    %c0_6 = arith.constant 0 : index
    %7 = vector.load %arg3[%c0_5, %c0_6] : memref<2x1xf32, #tpu.memory_space<vmem>>, vector<2x1xf32>
    %8 = vector.broadcast %7 : vector<2x1xf32> to vector<2x1024xf32>
    %9 = arith.mulf %8, %3 : vector<2x1024xf32>
    %10 = arith.addf %6, %9 : vector<2x1024xf32>
    %c0_7 = arith.constant 0 : index
    %11 = memref.load %arg1[%c0_7] : memref<16xf32, #tpu.memory_space<smem>>
    %12 = vector.extract_strided_slice %10 {offsets = [0, 0], sizes = [2, 256], strides = [1, 1]} : vector<2x1024xf32> to vector<2x256xf32>
    %13 = vector.broadcast %11 : f32 to vector<2x256xf32>
    %14 = arith.mulf %13, %12 : vector<2x256xf32>
    %c1 = arith.constant 1 : index
    %15 = memref.load %arg1[%c1] : memref<16xf32, #tpu.memory_space<smem>>
    %16 = vector.extract_strided_slice %10 {offsets = [0, 256], sizes = [2, 256], strides = [1, 1]} : vector<2x1024xf32> to vector<2x256xf32>
    %17 = vector.broadcast %15 : f32 to vector<2x256xf32>
    %18 = arith.mulf %17, %16 : vector<2x256xf32>
    %19 = arith.addf %14, %18 : vector<2x256xf32>
    %c2 = arith.constant 2 : index
    %20 = memref.load %arg1[%c2] : memref<16xf32, #tpu.memory_space<smem>>
    %21 = vector.extract_strided_slice %10 {offsets = [0, 512], sizes = [2, 256], strides = [1, 1]} : vector<2x1024xf32> to vector<2x256xf32>
    %22 = vector.broadcast %20 : f32 to vector<2x256xf32>
    %23 = arith.mulf %22, %21 : vector<2x256xf32>
    %24 = arith.addf %19, %23 : vector<2x256xf32>
    %c3 = arith.constant 3 : index
    %25 = memref.load %arg1[%c3] : memref<16xf32, #tpu.memory_space<smem>>
    %26 = vector.extract_strided_slice %10 {offsets = [0, 768], sizes = [2, 256], strides = [1, 1]} : vector<2x1024xf32> to vector<2x256xf32>
    %27 = vector.broadcast %25 : f32 to vector<2x256xf32>
    %28 = arith.mulf %27, %26 : vector<2x256xf32>
    %29 = arith.addf %24, %28 : vector<2x256xf32>
    %30 = vector.extract_strided_slice %3 {offsets = [0, 0], sizes = [2, 256], strides = [1, 1]} : vector<2x1024xf32> to vector<2x256xf32>
    %31 = arith.subf %29, %30 : vector<2x256xf32>
    %32 = arith.mulf %31, %31 : vector<2x256xf32>
    %c4 = arith.constant 4 : index
    %33 = memref.load %arg1[%c4] : memref<16xf32, #tpu.memory_space<smem>>
    %34 = vector.extract_strided_slice %10 {offsets = [0, 0], sizes = [2, 256], strides = [1, 1]} : vector<2x1024xf32> to vector<2x256xf32>
    %35 = vector.broadcast %33 : f32 to vector<2x256xf32>
    %36 = arith.mulf %35, %34 : vector<2x256xf32>
    %c5 = arith.constant 5 : index
    %37 = memref.load %arg1[%c5] : memref<16xf32, #tpu.memory_space<smem>>
    %38 = vector.extract_strided_slice %10 {offsets = [0, 256], sizes = [2, 256], strides = [1, 1]} : vector<2x1024xf32> to vector<2x256xf32>
    %39 = vector.broadcast %37 : f32 to vector<2x256xf32>
    %40 = arith.mulf %39, %38 : vector<2x256xf32>
    %41 = arith.addf %36, %40 : vector<2x256xf32>
    %c6 = arith.constant 6 : index
    %42 = memref.load %arg1[%c6] : memref<16xf32, #tpu.memory_space<smem>>
    %43 = vector.extract_strided_slice %10 {offsets = [0, 512], sizes = [2, 256], strides = [1, 1]} : vector<2x1024xf32> to vector<2x256xf32>
    %44 = vector.broadcast %42 : f32 to vector<2x256xf32>
    %45 = arith.mulf %44, %43 : vector<2x256xf32>
    %46 = arith.addf %41, %45 : vector<2x256xf32>
    %c7 = arith.constant 7 : index
    %47 = memref.load %arg1[%c7] : memref<16xf32, #tpu.memory_space<smem>>
    %48 = vector.extract_strided_slice %10 {offsets = [0, 768], sizes = [2, 256], strides = [1, 1]} : vector<2x1024xf32> to vector<2x256xf32>
    %49 = vector.broadcast %47 : f32 to vector<2x256xf32>
    %50 = arith.mulf %49, %48 : vector<2x256xf32>
    %51 = arith.addf %46, %50 : vector<2x256xf32>
    %52 = vector.extract_strided_slice %3 {offsets = [0, 256], sizes = [2, 256], strides = [1, 1]} : vector<2x1024xf32> to vector<2x256xf32>
    %53 = arith.subf %51, %52 : vector<2x256xf32>
    %54 = arith.mulf %53, %53 : vector<2x256xf32>
    %55 = arith.addf %32, %54 : vector<2x256xf32>
    %c8 = arith.constant 8 : index
    %56 = memref.load %arg1[%c8] : memref<16xf32, #tpu.memory_space<smem>>
    %57 = vector.extract_strided_slice %10 {offsets = [0, 0], sizes = [2, 256], strides = [1, 1]} : vector<2x1024xf32> to vector<2x256xf32>
    %58 = vector.broadcast %56 : f32 to vector<2x256xf32>
    %59 = arith.mulf %58, %57 : vector<2x256xf32>
    %c9 = arith.constant 9 : index
    %60 = memref.load %arg1[%c9] : memref<16xf32, #tpu.memory_space<smem>>
    %61 = vector.extract_strided_slice %10 {offsets = [0, 256], sizes = [2, 256], strides = [1, 1]} : vector<2x1024xf32> to vector<2x256xf32>
    %62 = vector.broadcast %60 : f32 to vector<2x256xf32>
    %63 = arith.mulf %62, %61 : vector<2x256xf32>
    %64 = arith.addf %59, %63 : vector<2x256xf32>
    %c10 = arith.constant 10 : index
    %65 = memref.load %arg1[%c10] : memref<16xf32, #tpu.memory_space<smem>>
    %66 = vector.extract_strided_slice %10 {offsets = [0, 512], sizes = [2, 256], strides = [1, 1]} : vector<2x1024xf32> to vector<2x256xf32>
    %67 = vector.broadcast %65 : f32 to vector<2x256xf32>
    %68 = arith.mulf %67, %66 : vector<2x256xf32>
    %69 = arith.addf %64, %68 : vector<2x256xf32>
    %c11 = arith.constant 11 : index
    %70 = memref.load %arg1[%c11] : memref<16xf32, #tpu.memory_space<smem>>
    %71 = vector.extract_strided_slice %10 {offsets = [0, 768], sizes = [2, 256], strides = [1, 1]} : vector<2x1024xf32> to vector<2x256xf32>
    %72 = vector.broadcast %70 : f32 to vector<2x256xf32>
    %73 = arith.mulf %72, %71 : vector<2x256xf32>
    %74 = arith.addf %69, %73 : vector<2x256xf32>
    %75 = vector.extract_strided_slice %3 {offsets = [0, 512], sizes = [2, 256], strides = [1, 1]} : vector<2x1024xf32> to vector<2x256xf32>
    %76 = arith.subf %74, %75 : vector<2x256xf32>
    %77 = arith.mulf %76, %76 : vector<2x256xf32>
    %78 = arith.addf %55, %77 : vector<2x256xf32>
    %c12 = arith.constant 12 : index
    %79 = memref.load %arg1[%c12] : memref<16xf32, #tpu.memory_space<smem>>
    %80 = vector.extract_strided_slice %10 {offsets = [0, 0], sizes = [2, 256], strides = [1, 1]} : vector<2x1024xf32> to vector<2x256xf32>
    %81 = vector.broadcast %79 : f32 to vector<2x256xf32>
    %82 = arith.mulf %81, %80 : vector<2x256xf32>
    %c13 = arith.constant 13 : index
    %83 = memref.load %arg1[%c13] : memref<16xf32, #tpu.memory_space<smem>>
    %84 = vector.extract_strided_slice %10 {offsets = [0, 256], sizes = [2, 256], strides = [1, 1]} : vector<2x1024xf32> to vector<2x256xf32>
    %85 = vector.broadcast %83 : f32 to vector<2x256xf32>
    %86 = arith.mulf %85, %84 : vector<2x256xf32>
    %87 = arith.addf %82, %86 : vector<2x256xf32>
    %c14 = arith.constant 14 : index
    %88 = memref.load %arg1[%c14] : memref<16xf32, #tpu.memory_space<smem>>
    %89 = vector.extract_strided_slice %10 {offsets = [0, 512], sizes = [2, 256], strides = [1, 1]} : vector<2x1024xf32> to vector<2x256xf32>
    %90 = vector.broadcast %88 : f32 to vector<2x256xf32>
    %91 = arith.mulf %90, %89 : vector<2x256xf32>
    %92 = arith.addf %87, %91 : vector<2x256xf32>
    %c15 = arith.constant 15 : index
    %93 = memref.load %arg1[%c15] : memref<16xf32, #tpu.memory_space<smem>>
    %94 = vector.extract_strided_slice %10 {offsets = [0, 768], sizes = [2, 256], strides = [1, 1]} : vector<2x1024xf32> to vector<2x256xf32>
    %95 = vector.broadcast %93 : f32 to vector<2x256xf32>
    %96 = arith.mulf %95, %94 : vector<2x256xf32>
    %97 = arith.addf %92, %96 : vector<2x256xf32>
    %98 = vector.extract_strided_slice %3 {offsets = [0, 768], sizes = [2, 256], strides = [1, 1]} : vector<2x1024xf32> to vector<2x256xf32>
    %99 = arith.subf %97, %98 : vector<2x256xf32>
    %100 = arith.mulf %99, %99 : vector<2x256xf32>
    %101 = arith.addf %78, %100 : vector<2x256xf32>
    %cst = arith.constant dense<0.000000e+00> : vector<2xf32>
    %102 = vector.multi_reduction <add>, %101, %cst [1] : vector<2x256xf32> to vector<2xf32>
    %103 = vector.shape_cast %102 : vector<2xf32> to vector<2x1xf32>
    %cst_8 = arith.constant 9.765625E-4 : f32
    %104 = vector.broadcast %cst_8 : f32 to vector<2x1xf32>
    %105 = arith.mulf %103, %104 : vector<2x1xf32>
    %c0_9 = arith.constant 0 : index
    %c0_10 = arith.constant 0 : index
    %106 = vector.load %arg6[%c0_9, %c0_10] : memref<2x1xf32, #tpu.memory_space<vmem>>, vector<2x1xf32>
    tpu.vector_store %arg6[%c0_9, %c0_10], %105 {strides = array<i32>} : memref<2x1xf32, #tpu.memory_space<vmem>>, vector<2x1xf32>,
    return
  }
  func.func @transform_0(%arg0: i32) -> i32 {
    %c0_i32 = arith.constant 0 : i32
    %c0_i32_0 = arith.constant 0 : i32
    return %c0_i32 : i32
  }
  func.func @transform_1(%arg0: i32) -> (i32, i32) {
    %c0_i32 = arith.constant 0 : i32
    %c0_i32_0 = arith.constant 0 : i32
    return %arg0, %c0_i32 : i32, i32
  }
  func.func @transform_2(%arg0: i32) -> (i32, i32) {
    %c0_i32 = arith.constant 0 : i32
    %c0_i32_0 = arith.constant 0 : i32
    return %arg0, %c0_i32 : i32, i32
  }
  func.func @transform_3(%arg0: i32) -> (i32, i32) {
    %c0_i32 = arith.constant 0 : i32
    %c0_i32_0 = arith.constant 0 : i32
    return %arg0, %c0_i32 : i32, i32
  }
  func.func @transform_4(%arg0: i32) -> (i32, i32) {
    %c0_i32 = arith.constant 0 : i32
    %c0_i32_0 = arith.constant 0 : i32
    return %arg0, %c0_i32 : i32, i32
  }
  func.func @transform_5(%arg0: i32) -> (i32, i32) {
    %c0_i32 = arith.constant 0 : i32
    %c0_i32_0 = arith.constant 0 : i32
    return %arg0, %c0_i32 : i32, i32
  }
}

</mosaic_0001>

<llo_original>
// kernel: tpu_custom_call.1
$region0: #{tpu_custom_call.1}
  #allocation0 [shape = 'u32[]', space=smem, size = 0x4, offset = 0x4, fixed_abs, tag = 'smem constant byte address 0x4 - core index']
  #allocation1 [shape = 'u32[144,128]{1,0:T(1,128)}', space=vmem, size = 0x12000, scoped, tag = 'internal scratch']
  %s0 = inlined_call_operand.vmem [shape: f32[16], index: 0, kind: input, shape index: {}]
  %s1 = inlined_call_operand.vmem [shape: f32[2,1], index: 1, kind: input, shape index: {}]
  %s2 = inlined_call_operand.vmem [shape: f32[2,1], index: 2, kind: input, shape index: {}]
  %s3 = inlined_call_operand.vmem [shape: bf16[2,1024], index: 3, kind: input, shape index: {}]
  %s4 = inlined_call_operand.hbm [shape: bf16[2,1024], index: 4, kind: input, shape index: {}]
  %s5 = inlined_call_operand.vmem [shape: f32[2,1], index: 5, kind: output, shape index: {}]
  %s6 = sld [smem:[#allocation0]]
  $region38: #{tpu_custom_call.1} parent=0
    _
  %s8 = ssub.s32 1, %s6
  %s9 = scalar_select 0, %s8, %s6
  $region1: #{tpu_custom_call.1} parent=0
    #allocation2 [shape = 'u8[512]{0}', space=smem, size = 0x200, scoped, tag = 'input window, operand 0, single buffered']
    #allocation3 [shape = 's32[1]{0}', space=sflag, size = 0x4, scoped, tag = 'scoped memory for tpu_custom_call.1']
    #allocation4 [shape = 's32[1]{0}', space=sflag, size = 0x4, scoped, tag = 'scoped memory for tpu_custom_call.1']
    #allocation5 [shape = 'u8[4096]{0}', space=vmem, size = 0x1000, scoped, tag = 'input window, operand 4, single buffered']
    %10 = vsyncpa [#allocation4], 0
    %11 = vsyncpa [#allocation3], 0
    // Predicated region
    $region2: #{tpu_custom_call.1} parent=1 // pred_check
      _
    $region3: #{tpu_custom_call.1} parent=1 // pred_check_branch
      %13 = sbr.rel (0) target = $region5
    $region4: #{tpu_custom_call.1} parent=1 // pred_region
      %s15 = ssub.s32 16, 16
      %16 = vsyncadd [#allocation4], %s15
      %s18 = sshll.u32 %s0, 4
      %s19 = int_to_ptr.vmem [resolvable:$true] %s18
      %21 = dma.vmem_to_smem %s19, 16, [#allocation2], [#allocation4]
    $region5: #{tpu_custom_call.1} parent=1 // pred_fallthru
      _
    // Predicated region
    $region6: #{tpu_custom_call.1} parent=1 // pred_check
      _
    $region7: #{tpu_custom_call.1} parent=1 // pred_check_branch
      %23 = sbr.rel (0) target = $region9
    $region8: #{tpu_custom_call.1} parent=1 // pred_region
      _
    $region9: #{tpu_custom_call.1} parent=1 // pred_fallthru
      _
    // Predicated region
    $region10: #{tpu_custom_call.1} parent=1 // pred_check
      _
    $region11: #{tpu_custom_call.1} parent=1 // pred_check_branch
      %25 = sbr.rel (0) target = $region13
    $region12: #{tpu_custom_call.1} parent=1 // pred_region
      _
    $region13: #{tpu_custom_call.1} parent=1 // pred_fallthru
      _
    // Predicated region
    $region14: #{tpu_custom_call.1} parent=1 // pred_check
      _
    $region15: #{tpu_custom_call.1} parent=1 // pred_check_branch
      %27 = sbr.rel (0) target = $region17
    $region16: #{tpu_custom_call.1} parent=1 // pred_region
      _
    $region17: #{tpu_custom_call.1} parent=1 // pred_fallthru
      _
    // Predicated region
    $region18: #{tpu_custom_call.1} parent=1 // pred_check
      _
    $region19: #{tpu_custom_call.1} parent=1 // pred_check_branch
      %29 = sbr.rel (0) target = $region21
    $region20: #{tpu_custom_call.1} parent=1 // pred_region
      %s31 = ssub.s32 128, 128
      %32 = vsyncadd [#allocation3], %s31
      %s34 = sshll.u32 [#allocation5], 4
      %s35 = int_to_ptr.vmem [resolvable:$true] %s34
      %37 = dma.hbm_to_vmem [thread:$0]  %s4, 128, %s35, [#allocation3]
    $region21: #{tpu_custom_call.1} parent=1 // pred_fallthru
      _
    // Predicated region
    $region22: #{tpu_custom_call.1} parent=1 // pred_check
      _
    $region23: #{tpu_custom_call.1} parent=1 // pred_check_branch
      %39 = sbr.rel (0) target = $region25
    $region24: #{tpu_custom_call.1} parent=1 // pred_region
      %40 = dma.done [#allocation4], 16
    $region25: #{tpu_custom_call.1} parent=1 // pred_fallthru
      _
    // Predicated region
    $region26: #{tpu_custom_call.1} parent=1 // pred_check
      _
    $region27: #{tpu_custom_call.1} parent=1 // pred_check_branch
      %42 = sbr.rel (0) target = $region29
    $region28: #{tpu_custom_call.1} parent=1 // pred_region
      %43 = dma.done [#allocation3], 128
    $region29: #{tpu_custom_call.1} parent=1 // pred_fallthru
      _
    %44 = sfence
    %v45 = vld [vmem:[%s3] sm:$0xff]
    %v46 = vunpack.c.l.bf16 %v45
    %v47 = vunpack.c.h.bf16 %v45
    %v48 = vld [vmem:[#allocation5] sm:$0xff]
    %v49 = vunpack.c.l.bf16 %v48
    %v50 = vunpack.c.h.bf16 %v48
    %v51 = vld [vmem:[%s1] sm:$0x3]
    %53 = vset.pattern.permute.xlu0 0
    %54 = vperm.xlu0 %53, %v51
    %v55 = vpop.permute.xlu0 %54
    %v59 = vcombine.high %v46, %v46
    %v61 = vunpack.c.l.s4 1983009808
    %v62 = vunpack.c.0.s8 %v61
    %v63 = vlaneseq
    %v64 = vshrl.u32 %v63, 7
    %v65 = vsub.s32 %v62, %v64
    %v66 = vrot.slane %v46, %v65
    %v68 = vunpack.c.l.s4 1983009808
    %v69 = vunpack.c.0.s8 %v68
    %v70 = vlaneseq
    %v71 = vshrl.u32 %v70, 7
    %v72 = vsub.s32 %v69, %v71
    %v73 = vrot.slane %v59, %v72
    %v74 = vcombine.high %v66, %v66
    %v75 = vcombine.high %v73, %v73
    %v76 = vcombine.high %v47, %v47
    %v78 = vunpack.c.l.s4 1983009808
    %v79 = vunpack.c.0.s8 %v78
    %v80 = vlaneseq
    %v81 = vshrl.u32 %v80, 7
    %v82 = vsub.s32 %v79, %v81
    %v83 = vrot.slane %v47, %v82
    %v85 = vunpack.c.l.s4 1983009808
    %v86 = vunpack.c.0.s8 %v85
    %v87 = vlaneseq
    %v88 = vshrl.u32 %v87, 7
    %v89 = vsub.s32 %v86, %v88
    %v90 = vrot.slane %v76, %v89
    %v91 = vcombine.high %v83, %v83
    %v92 = vcombine.high %v90, %v90
    %v101 = vmul.f32 %v55, %v66
    %v102 = vmul.f32 %v55, %v74
    %v103 = vmul.f32 %v55, %v73
    %v104 = vmul.f32 %v55, %v75
    %v105 = vmul.f32 %v55, %v83
    %v106 = vmul.f32 %v55, %v91
    %v107 = vmul.f32 %v55, %v90
    %v108 = vmul.f32 %v55, %v92
    %v109 = vld [vmem:[%s2] sm:$0x3]
    %111 = vset.pattern.permute.xlu0 0
    %112 = vperm.xlu0 %111, %v109
    %v113 = vpop.permute.xlu0 %112
    %v117 = vcombine.high %v49, %v49
    %v119 = vunpack.c.l.s4 1983009808
    %v120 = vunpack.c.0.s8 %v119
    %v121 = vlaneseq
    %v122 = vshrl.u32 %v121, 7
    %v123 = vsub.s32 %v120, %v122
    %v124 = vrot.slane %v49, %v123
    %v126 = vunpack.c.l.s4 1983009808
    %v127 = vunpack.c.0.s8 %v126
    %v128 = vlaneseq
    %v129 = vshrl.u32 %v128, 7
    %v130 = vsub.s32 %v127, %v129
    %v131 = vrot.slane %v117, %v130
    %v132 = vcombine.high %v124, %v124
    %v133 = vcombine.high %v131, %v131
    %v134 = vcombine.high %v50, %v50
    %v136 = vunpack.c.l.s4 1983009808
    %v137 = vunpack.c.0.s8 %v136
    %v138 = vlaneseq
    %v139 = vshrl.u32 %v138, 7
    %v140 = vsub.s32 %v137, %v139
    %v141 = vrot.slane %v50, %v140
    %v143 = vunpack.c.l.s4 1983009808
    %v144 = vunpack.c.0.s8 %v143
    %v145 = vlaneseq
    %v146 = vshrl.u32 %v145, 7
    %v147 = vsub.s32 %v144, %v146
    %v148 = vrot.slane %v134, %v147
    %v149 = vcombine.high %v141, %v141
    %v150 = vcombine.high %v148, %v148
    %v159 = vmul.f32 %v113, %v124
    %v160 = vmul.f32 %v113, %v132
    %v161 = vmul.f32 %v113, %v131
    %v162 = vmul.f32 %v113, %v133
    %v163 = vmul.f32 %v113, %v141
    %v164 = vmul.f32 %v113, %v149
    %v165 = vmul.f32 %v113, %v148
    %v166 = vmul.f32 %v113, %v150
    %v167 = vadd.f32 %v101, %v159
    %v168 = vadd.f32 %v102, %v160
    %v169 = vadd.f32 %v103, %v161
    %v170 = vadd.f32 %v104, %v162
    %v171 = vadd.f32 %v105, %v163
    %v172 = vadd.f32 %v106, %v164
    %v173 = vadd.f32 %v107, %v165
    %v174 = vadd.f32 %v108, %v166
    %s175 = sld [smem:[#allocation2]]
    %v176 = vstv %s175
    %v177 = vmul.f32 %v176, %v167
    %v178 = vmul.f32 %v176, %v168
    %s179 = sld [smem:[#allocation2 + $0x1]]
    %v180 = vstv %s179
    %v181 = vmul.f32 %v180, %v169
    %v182 = vmul.f32 %v180, %v170
    %v183 = vadd.f32 %v177, %v181
    %v184 = vadd.f32 %v178, %v182
    %s185 = sld [smem:[#allocation2 + $0x2]]
    %v186 = vstv %s185
    %v187 = vmul.f32 %v186, %v171
    %v188 = vmul.f32 %v186, %v172
    %v189 = vadd.f32 %v183, %v187
    %v190 = vadd.f32 %v184, %v188
    %s191 = sld [smem:[#allocation2 + $0x3]]
    %v192 = vstv %s191
    %v193 = vmul.f32 %v192, %v173
    %v194 = vmul.f32 %v192, %v174
    %v195 = vadd.f32 %v189, %v193
    %v196 = vadd.f32 %v190, %v194
    %v197 = vsub.f32 %v195, %v124
    %v198 = vsub.f32 %v196, %v132
    %v199 = vmul.f32 %v197, %v197
    %v200 = vmul.f32 %v198, %v198
    %s201 = sld [smem:[#allocation2 + $0x4]]
    %v202 = vstv %s201
    %v203 = vmul.f32 %v202, %v167
    %v204 = vmul.f32 %v202, %v168
    %s205 = sld [smem:[#allocation2 + $0x5]]
    %v206 = vstv %s205
    %v207 = vmul.f32 %v206, %v169
    %v208 = vmul.f32 %v206, %v170
    %v209 = vadd.f32 %v203, %v207
    %v210 = vadd.f32 %v204, %v208
    %s211 = sld [smem:[#allocation2 + $0x6]]
    %v212 = vstv %s211
    %v213 = vmul.f32 %v212, %v171
    %v214 = vmul.f32 %v212, %v172
    %v215 = vadd.f32 %v209, %v213
    %v216 = vadd.f32 %v210, %v214
    %s217 = sld [smem:[#allocation2 + $0x7]]
    %v218 = vstv %s217
    %v219 = vmul.f32 %v218, %v173
    %v220 = vmul.f32 %v218, %v174
    %v221 = vadd.f32 %v215, %v219
    %v222 = vadd.f32 %v216, %v220
    %v223 = vsub.f32 %v221, %v131
    %v224 = vsub.f32 %v222, %v133
    %v225 = vmul.f32 %v223, %v223
    %v226 = vmul.f32 %v224, %v224
    %v227 = vadd.f32 %v199, %v225
    %v228 = vadd.f32 %v200, %v226
    %s229 = sld [smem:[#allocation2 + $0x8]]
    %v230 = vstv %s229
    %v231 = vmul.f32 %v230, %v167
    %v232 = vmul.f32 %v230, %v168
    %s233 = sld [smem:[#allocation2 + $0x9]]
    %v234 = vstv %s233
    %v235 = vmul.f32 %v234, %v169
    %v236 = vmul.f32 %v234, %v170
    %v237 = vadd.f32 %v231, %v235
    %v238 = vadd.f32 %v232, %v236
    %s239 = sld [smem:[#allocation2 + $0xa]]
    %v240 = vstv %s239
    %v241 = vmul.f32 %v240, %v171
    %v242 = vmul.f32 %v240, %v172
    %v243 = vadd.f32 %v237, %v241
    %v244 = vadd.f32 %v238, %v242
    %s245 = sld [smem:[#allocation2 + $0xb]]
    %v246 = vstv %s245
    %v247 = vmul.f32 %v246, %v173
    %v248 = vmul.f32 %v246, %v174
    %v249 = vadd.f32 %v243, %v247
    %v250 = vadd.f32 %v244, %v248
    %v251 = vsub.f32 %v249, %v141
    %v252 = vsub.f32 %v250, %v149
    %v253 = vmul.f32 %v251, %v251
    %v254 = vmul.f32 %v252, %v252
    %v255 = vadd.f32 %v227, %v253
    %v256 = vadd.f32 %v228, %v254
    %s257 = sld [smem:[#allocation2 + $0xc]]
    %v258 = vstv %s257
    %v259 = vmul.f32 %v258, %v167
    %v260 = vmul.f32 %v258, %v168
    %s261 = sld [smem:[#allocation2 + $0xd]]
    %v262 = vstv %s261
    %v263 = vmul.f32 %v262, %v169
    %v264 = vmul.f32 %v262, %v170
    %v265 = vadd.f32 %v259, %v263
    %v266 = vadd.f32 %v260, %v264
    %s267 = sld [smem:[#allocation2 + $0xe]]
    %v268 = vstv %s267
    %v269 = vmul.f32 %v268, %v171
    %v270 = vmul.f32 %v268, %v172
    %v271 = vadd.f32 %v265, %v269
    %v272 = vadd.f32 %v266, %v270
    %s273 = sld [smem:[#allocation2 + $0xf]]
    %v274 = vstv %s273
    %v275 = vmul.f32 %v274, %v173
    %v276 = vmul.f32 %v274, %v174
    %v277 = vadd.f32 %v271, %v275
    %v278 = vadd.f32 %v272, %v276
    %v279 = vsub.f32 %v277, %v148
    %v280 = vsub.f32 %v278, %v150
    %v281 = vmul.f32 %v279, %v279
    %v282 = vmul.f32 %v280, %v280
    %v283 = vadd.f32 %v255, %v281
    %v284 = vadd.f32 %v256, %v282
    %vm285 = vcmask 1041408
    %v286 = vsel %vm285, %v283, 0.0
    %v287 = vsel %vm285, %v284, 0.0
    %v288 = vadd.f32 %v286, %v287
    %289 = vadd.xlane.f32.xlu0 %v288
    %v290 = vpop.xlane.xlu0 %289
    %v291 = vmul.f32 %v290, 0.0009765625
    %vm292 = vcmask 1024
    %293 = vst.msk [vmem:[%s5] sm:$0x3] %vm292, %v291
    // Predicated region
    $region30: #{tpu_custom_call.1} parent=1 // pred_check
      _
    $region31: #{tpu_custom_call.1} parent=1 // pred_check_branch
      %295 = sbr.rel (0) target = $region33
    $region32: #{tpu_custom_call.1} parent=1 // pred_region
      _
    $region33: #{tpu_custom_call.1} parent=1 // pred_fallthru
      _
    // Predicated region
    $region34: #{tpu_custom_call.1} parent=1 // pred_check
      _
    $region35: #{tpu_custom_call.1} parent=1 // pred_check_branch
      %297 = sbr.rel (0) target = $region37
    $region36: #{tpu_custom_call.1} parent=1 // pred_region
      _
    $region37: #{tpu_custom_call.1} parent=1 // pred_fallthru
      _
    %298 = vsyncpa [#allocation3], 1
    %299 = vsyncpa [#allocation4], 1

</llo_original>
